<compile_context>
chip_gen: v7x
topology: tpu7x:2x2x1
jax: 0.10.0
libtpu: 0.0.40
codegen_flags: <defaults>
</compile_context>

<pallas_src>
import functools

import jax
import jax.numpy as jnp
from jax.experimental import pallas as pl
from jax.experimental.pallas import tpu as pltpu


# ---------------------------------------------------------------------------
# Fused finalize kernel: sigmoid(top-k logits) + box transform/scale of the
# top-k gathered boxes.  Everything is (B, k)-sized, so a single grid step
# with full-array blocks is both the simplest and the fastest option.
# ---------------------------------------------------------------------------
def _finalize_kernel(logits_ref, boxes_ref, scale_ref, scores_ref, xywh_ref):
    """logits_ref : (B, k)      raw top-k class logits (any float dtype)
       boxes_ref  : (B, k, 4)   (cx, cy, w, h) in [0, 1], gathered per winner
       scale_ref  : (B, 1, 4)   (W, H, W, H) as float32
       scores_ref : (B, k)      sigmoid scores, float32
       xywh_ref   : (B, k, 4)   pixel-space COCO (x, y, w, h), float32
    """
    # Cast after load: logits/boxes may arrive in bf16; math done in f32.
    scores_ref[...] = jax.nn.sigmoid(logits_ref[...].astype(jnp.float32))

    b = boxes_ref[...].astype(jnp.float32)          # (B, k, 4)
    s = scale_ref[...]                              # (B, 1, 4)
    wh = b[:, :, 2:4]                               # (w, h)
    xy = b[:, :, 0:2] - 0.5 * wh                    # (x1, y1) = (cx-w/2, cy-h/2)
    xywh_ref[:, :, 0:2] = xy * s[:, :, 0:2]         # x1*W, y1*H
    xywh_ref[:, :, 2:4] = wh * s[:, :, 2:4]         # w*W,  h*H


def _finalize_topk(top_logits, top_boxes, scale):
    B, k = top_logits.shape
    return pl.pallas_call(
        _finalize_kernel,
        out_shape=(
            jax.ShapeDtypeStruct((B, k), jnp.float32),
            jax.ShapeDtypeStruct((B, k, 4), jnp.float32),
        ),
        grid_spec=pl.GridSpec(
            grid=(1,),
            in_specs=[
                pl.BlockSpec((B, k), lambda i: (0, 0)),
                pl.BlockSpec((B, k, 4), lambda i: (0, 0, 0)),
                pl.BlockSpec((B, 1, 4), lambda i: (0, 0, 0)),
            ],
            out_specs=(
                pl.BlockSpec((B, k), lambda i: (0, 0)),
                pl.BlockSpec((B, k, 4), lambda i: (0, 0, 0)),
            ),
        ),
        compiler_params=pltpu.CompilerParams(
            dimension_semantics=("arbitrary",)),
    )(top_logits, top_boxes, scale)


# ---------------------------------------------------------------------------
# Whole device pipeline under one jit: top_k on raw logits (monotone sigmoid),
# gather the k winning boxes, then the fused Pallas finalize kernel.
# ---------------------------------------------------------------------------
@functools.partial(jax.jit, static_argnames=("topk",))
def _device_postprocess(pred_logits, pred_boxes, target_sizes, *, topk):
    B, Q, C = pred_logits.shape
    k = min(int(topk), Q * C)

    # sigmoid is monotone -> top_k on raw logits selects the same detections
    # as top_k on sigmoid(logits); only the full-tensor sigmoid is avoided.
    flat_logits = pred_logits.reshape(B, Q * C)         # native dtype, free reshape
    top_logits, top_idx = jax.lax.top_k(flat_logits, k)  # (B, k)

    # Row-major (B, Q, C) -> (B, Q*C) flatten: flat = q*C + c.
    top_labels = top_idx % C                             # class ids
    top_queries = top_idx // C                           # query ids

    # Gather only the k winning boxes, then scale just those (k << Q).
    top_boxes = jnp.take_along_axis(
        pred_boxes, top_queries[..., None], axis=1)      # (B, k, 4)

    ts = target_sizes.astype(jnp.float32)                # (B, 2) = (h, w)
    scale = jnp.stack(
        [ts[:, 1], ts[:, 0], ts[:, 1], ts[:, 0]], axis=1)[:, None, :]  # (B, 1, 4)

    top_vals, top_xywh = _finalize_topk(top_logits, top_boxes, scale)
    return top_vals, top_labels, top_xywh


class BoxPostProcess:
    """JAX/Pallas equivalent of the PyTorch BoxPostProcess module."""

    def __init__(self, topk=100, score_threshold=0.05):
        self.topk = int(topk)
        self.score_threshold = float(score_threshold)

    def __call__(self, outputs, target_sizes, image_ids):
        out_logits = outputs["pred_logits"]              # (B, Q, C)
        out_bbox = outputs["pred_boxes"]                 # (B, Q, 4)
        assert out_logits.shape[0] == target_sizes.shape[0]
        assert target_sizes.shape[1] == 2
        assert image_ids.shape[0] == out_logits.shape[0]

        B, Q, C = out_logits.shape
        k = min(self.topk, Q * C)

        top_vals, top_labels, top_boxes = _device_postprocess(
            out_logits, out_bbox, target_sizes, topk=self.topk)

        # Single host sync at the very end (threshold-then-topk == topk-then-
        # threshold because thresholding only removes the smallest scores).
        top_vals, top_labels, top_boxes, image_ids_np = jax.device_get(
            jax.block_until_ready((top_vals, top_labels, top_boxes, image_ids)))

        # TODO(synk): result ordering may differ from PyTorch when fewer than
        # `topk` detections pass the threshold (PyTorch keeps flat-index order
        # in that branch; here detections are always score-sorted), and
        # near-threshold ties may flip when logits arrive in bf16.
        results = []
        for b in range(B):
            image_id = int(image_ids_np[b])
            for d in range(k):
                score = float(top_vals[b, d])
                if score <= self.score_threshold:
                    continue
                results.append({
                    "image_id": image_id,
                    "category_id": int(top_labels[b, d]),
                    "bbox": [float(x) for x in top_boxes[b, d]],
                    "score": score,
                })
        return results


if __name__ == "__main__":
    key = jax.random.PRNGKey(0)
    k1, k2 = jax.random.split(key)

    B, Q, C = 2, 16, 32   # batch, num_queries, num_classes
    TOPK = 10

    pred_logits = jax.random.normal(k1, (B, Q, C), dtype=jnp.float32)
    # boxes (cx, cy, w, h) in [0, 1]; keep them well inside the image
    pred_boxes = jax.random.uniform(
        k2, (B, Q, 4), dtype=jnp.float32, minval=0.25, maxval=0.75)
    target_sizes = jnp.array([[480, 640], [600, 800]], dtype=jnp.int32)  # (h, w)
    image_ids = jnp.array([11, 42], dtype=jnp.int32)

    # --- correctness check of the device pipeline against a plain-jnp reference ---
    kk = min(TOPK, Q * C)
    top_vals, top_labels, top_boxes = jax.block_until_ready(
        _device_postprocess(pred_logits, pred_boxes, target_sizes, topk=TOPK))

    ref_scores = jax.nn.sigmoid(pred_logits.astype(jnp.float32)).reshape(B, Q * C)
    ref_vals, ref_idx = jax.lax.top_k(ref_scores, kk)
    ref_labels = ref_idx % C
    ref_queries = ref_idx // C
    ref_sel = jnp.take_along_axis(pred_boxes, ref_queries[..., None], axis=1)
    W = target_sizes[:, 1].astype(jnp.float32)[:, None]
    H = target_sizes[:, 0].astype(jnp.float32)[:, None]
    cx, cy, bw, bh = (ref_sel[..., i] for i in range(4))
    ref_xywh = jnp.stack(
        [(cx - 0.5 * bw) * W, (cy - 0.5 * bh) * H, bw * W, bh * H], axis=-1)

    assert jnp.allclose(top_vals, ref_vals, atol=1e-5, rtol=1e-5)
    assert bool(jnp.all(top_labels == ref_labels))
    assert jnp.allclose(top_boxes, ref_xywh, atol=1e-4, rtol=1e-5)

    # --- full module path ---
    post = BoxPostProcess(topk=TOPK, score_threshold=0.05)
    results = post({"pred_logits": pred_logits, "pred_boxes": pred_boxes},
                   target_sizes, image_ids)

    assert isinstance(results, list) and len(results) > 0
    assert all(set(d) == {"image_id", "category_id", "bbox", "score"}
               for d in results)
    print("KERNEL_OK")
</pallas_src>

<mosaic_0001>
module attributes {stable_mosaic.version = 11 : i64} {
  func.func @_finalize_kernel(%arg0: i32, %arg1: memref<2x10xf32, #tpu.memory_space<vmem>>, %arg2: memref<2x10x4xf32, #tpu.memory_space<vmem>>, %arg3: memref<2x1x4xf32, #tpu.memory_space<vmem>>, %arg4: memref<2x10xf32, #tpu.memory_space<vmem>>, %arg5: memref<2x10x4xf32, #tpu.memory_space<vmem>>) attributes {dimension_semantics = [#tpu.dimension_semantics<arbitrary>], iteration_bounds = array<i64: 1>, scalar_prefetch = 0 : i64, scratch_operands = 0 : i64, tpu.core_type = #tpu.core_type<tc>, window_params = [{pipeline_mode = #tpu.pipeline_mode<synchronous>, transform_indices = @transform_0, window_bounds = array<i64: 2, 10>}, {pipeline_mode = #tpu.pipeline_mode<synchronous>, transform_indices = @transform_1, window_bounds = array<i64: 2, 10, 4>}, {pipeline_mode = #tpu.pipeline_mode<synchronous>, transform_indices = @transform_2, window_bounds = array<i64: 2, 1, 4>}, {pipeline_mode = #tpu.pipeline_mode<synchronous>, transform_indices = @transform_3, window_bounds = array<i64: 2, 10>}, {pipeline_mode = #tpu.pipeline_mode<synchronous>, transform_indices = @transform_4, window_bounds = array<i64: 2, 10, 4>}]} {
    %c0 = arith.constant 0 : index
    %c0_0 = arith.constant 0 : index
    %0 = vector.load %arg1[%c0, %c0_0] : memref<2x10xf32, #tpu.memory_space<vmem>>, vector<2x10xf32>
    %1 = arith.negf %0 : vector<2x10xf32>
    %2 = math.exp %1 : vector<2x10xf32>
    %cst = arith.constant 1.000000e+00 : f32
    %3 = vector.broadcast %cst : f32 to vector<2x10xf32>
    %4 = arith.addf %3, %2 : vector<2x10xf32>
    %5 = arith.divf %3, %4 : vector<2x10xf32>
    %c0_1 = arith.constant 0 : index
    %c0_2 = arith.constant 0 : index
    %6 = vector.load %arg4[%c0_1, %c0_2] : memref<2x10xf32, #tpu.memory_space<vmem>>, vector<2x10xf32>
    tpu.vector_store %arg4[%c0_1, %c0_2], %5 {strides = array<i32>} : memref<2x10xf32, #tpu.memory_space<vmem>>, vector<2x10xf32>,
    %c0_3 = arith.constant 0 : index
    %c0_4 = arith.constant 0 : index
    %c0_5 = arith.constant 0 : index
    %7 = vector.load %arg2[%c0_3, %c0_4, %c0_5] : memref<2x10x4xf32, #tpu.memory_space<vmem>>, vector<2x10x4xf32>
    %c0_6 = arith.constant 0 : index
    %c0_7 = arith.constant 0 : index
    %c0_8 = arith.constant 0 : index
    %8 = vector.load %arg3[%c0_6, %c0_7, %c0_8] : memref<2x1x4xf32, #tpu.memory_space<vmem>>, vector<2x1x4xf32>
    %9 = vector.extract_strided_slice %7 {offsets = [0, 0, 2], sizes = [2, 10, 2], strides = [1, 1, 1]} : vector<2x10x4xf32> to vector<2x10x2xf32>
    %10 = vector.extract_strided_slice %7 {offsets = [0, 0, 0], sizes = [2, 10, 2], strides = [1, 1, 1]} : vector<2x10x4xf32> to vector<2x10x2xf32>
    %cst_9 = arith.constant 5.000000e-01 : f32
    %11 = vector.broadcast %cst_9 : f32 to vector<2x10x2xf32>
    %12 = arith.mulf %11, %9 : vector<2x10x2xf32>
    %13 = arith.subf %10, %12 : vector<2x10x2xf32>
    %14 = vector.extract_strided_slice %8 {offsets = [0, 0, 0], sizes = [2, 1, 2], strides = [1, 1, 1]} : vector<2x1x4xf32> to vector<2x1x2xf32>
    %15 = vector.broadcast %14 : vector<2x1x2xf32> to vector<2x10x2xf32>
    %16 = arith.mulf %13, %15 : vector<2x10x2xf32>
    %c0_10 = arith.constant 0 : index
    %c0_11 = arith.constant 0 : index
    %c0_12 = arith.constant 0 : index
    %17 = vector.load %arg5[%c0_10, %c0_11, %c0_12] : memref<2x10x4xf32, #tpu.memory_space<vmem>>, vector<2x10x2xf32>
    tpu.vector_store %arg5[%c0_10, %c0_11, %c0_12], %16 {strides = array<i32>} : memref<2x10x4xf32, #tpu.memory_space<vmem>>, vector<2x10x2xf32>,
    %18 = vector.extract_strided_slice %8 {offsets = [0, 0, 2], sizes = [2, 1, 2], strides = [1, 1, 1]} : vector<2x1x4xf32> to vector<2x1x2xf32>
    %19 = vector.broadcast %18 : vector<2x1x2xf32> to vector<2x10x2xf32>
    %20 = arith.mulf %9, %19 : vector<2x10x2xf32>
    %c0_13 = arith.constant 0 : index
    %c0_14 = arith.constant 0 : index
    %c2 = arith.constant 2 : index
    %21 = vector.load %arg5[%c0_13, %c0_14, %c2] : memref<2x10x4xf32, #tpu.memory_space<vmem>>, vector<2x10x2xf32>
    tpu.vector_store %arg5[%c0_13, %c0_14, %c2], %20 {strides = array<i32>} : memref<2x10x4xf32, #tpu.memory_space<vmem>>, vector<2x10x2xf32>,
    return
  }
  func.func @transform_0(%arg0: i32) -> (i32, i32) {
    %c0_i32 = arith.constant 0 : i32
    %c0_i32_0 = arith.constant 0 : i32
    %c0_i32_1 = arith.constant 0 : i32
    return %c0_i32, %c0_i32_0 : i32, i32
  }
  func.func @transform_1(%arg0: i32) -> (i32, i32, i32) {
    %c0_i32 = arith.constant 0 : i32
    %c0_i32_0 = arith.constant 0 : i32
    %c0_i32_1 = arith.constant 0 : i32
    %c0_i32_2 = arith.constant 0 : i32
    return %c0_i32, %c0_i32_0, %c0_i32_1 : i32, i32, i32
  }
  func.func @transform_2(%arg0: i32) -> (i32, i32, i32) {
    %c0_i32 = arith.constant 0 : i32
    %c0_i32_0 = arith.constant 0 : i32
    %c0_i32_1 = arith.constant 0 : i32
    %c0_i32_2 = arith.constant 0 : i32
    return %c0_i32, %c0_i32_0, %c0_i32_1 : i32, i32, i32
  }
  func.func @transform_3(%arg0: i32) -> (i32, i32) {
    %c0_i32 = arith.constant 0 : i32
    %c0_i32_0 = arith.constant 0 : i32
    %c0_i32_1 = arith.constant 0 : i32
    return %c0_i32, %c0_i32_0 : i32, i32
  }
  func.func @transform_4(%arg0: i32) -> (i32, i32, i32) {
    %c0_i32 = arith.constant 0 : i32
    %c0_i32_0 = arith.constant 0 : i32
    %c0_i32_1 = arith.constant 0 : i32
    %c0_i32_2 = arith.constant 0 : i32
    return %c0_i32, %c0_i32_0, %c0_i32_1 : i32, i32, i32
  }
}

</mosaic_0001>

<llo_original>
// kernel: _device_postprocess.1
$region0: #{_device_postprocess.1}
  #allocation0 [shape = 'u32[]', space=smem, size = 0x4, offset = 0x4, fixed_abs, tag = 'smem constant byte address 0x4 - core index']
  #allocation1 [shape = 'u32[144,128]{1,0:T(1,128)}', space=vmem, size = 0x12000, scoped, tag = 'internal scratch']
  %s0 = inlined_call_operand.vmem [shape: f32[2,10], index: 0, kind: input, shape index: {}]
  %s1 = inlined_call_operand.vmem [shape: f32[2,10,4], index: 1, kind: input, shape index: {}]
  %s2 = inlined_call_operand.vmem [shape: f32[2,1,4], index: 2, kind: input, shape index: {}]
  %s3 = inlined_call_operand.hbm [shape: f32[2,10], index: 3, kind: output, shape index: {0}]
  %s4 = inlined_call_operand.vmem [shape: f32[2,10,4], index: 4, kind: output, shape index: {1}]
  %5 = xla_tuple %s3, %s4
  %s6 = sld [smem:[#allocation0]]
  $region30: #{_device_postprocess.1} parent=0
    _
  %s8 = ssub.s32 1, %s6
  %s9 = scalar_select 0, %s8, %s6
  $region1: #{_device_postprocess.1} parent=0
    #allocation2 [shape = 'u8[1024]{0}', space=vmem, size = 0x400, scoped, tag = 'output window, operand 0, single buffered']
    #allocation3 [shape = 's32[1]{0}', space=sflag, size = 0x4, scoped, tag = 'scoped memory for _device_postprocess.1']
    %10 = vsyncpa [#allocation3], 0
    // Predicated region
    $region2: #{_device_postprocess.1} parent=1 // pred_check
      _
    $region3: #{_device_postprocess.1} parent=1 // pred_check_branch
      %12 = sbr.rel (0) target = $region5
    $region4: #{_device_postprocess.1} parent=1 // pred_region
      _
    $region5: #{_device_postprocess.1} parent=1 // pred_fallthru
      _
    // Predicated region
    $region6: #{_device_postprocess.1} parent=1 // pred_check
      _
    $region7: #{_device_postprocess.1} parent=1 // pred_check_branch
      %14 = sbr.rel (0) target = $region9
    $region8: #{_device_postprocess.1} parent=1 // pred_region
      _
    $region9: #{_device_postprocess.1} parent=1 // pred_fallthru
      _
    // Predicated region
    $region10: #{_device_postprocess.1} parent=1 // pred_check
      _
    $region11: #{_device_postprocess.1} parent=1 // pred_check_branch
      %16 = sbr.rel (0) target = $region13
    $region12: #{_device_postprocess.1} parent=1 // pred_region
      _
    $region13: #{_device_postprocess.1} parent=1 // pred_fallthru
      _
    %v17 = vld [vmem:[%s0] sm:$0x3]
    %v18 = vxor.u32 %v17, 2147483648
    %v19 = vmul.f32 %v18, 1.442695
    %v20 = vpow.pop %v19
    %v21 = vadd.f32 %v20, 1.0
    %v22 = vrcp.pop %v21
    %v23 = vmul.f32 1.0, %v22
    %vm24 = vcmask 74752
    %25 = vst.msk [vmem:[#allocation2] sm:$0x3] %vm24, %v23
    %v26 = vld [vmem:[%s1] sm:$0xff]
    %v27 = vld [vmem:[%s1 + $0x8] sm:$0x3]
    %v28 = vld [vmem:[%s1 + $0x10] sm:$0xff]
    %v29 = vld [vmem:[%s1 + $0x18] sm:$0x3]
    %v30 = vld [vmem:[%s2] sm:$0x1]
    %v31 = vld [vmem:[%s2 + $0x1] sm:$0x1]
    %v32 = vmul.f32 %v26, 0.5
    %v33 = vmul.f32 %v27, 0.5
    %v34 = vmul.f32 %v28, 0.5
    %v35 = vmul.f32 %v29, 0.5
    %40 = vrot.lane.b32.xlu0 %v32, 126
    %v41 = vpop.permute.xlu0 %40
    %42 = vrot.lane.b32.xlu0 %v33, 126
    %v43 = vpop.permute.xlu0 %42
    %44 = vrot.lane.b32.xlu0 %v34, 126
    %v45 = vpop.permute.xlu0 %44
    %46 = vrot.lane.b32.xlu0 %v35, 126
    %v47 = vpop.permute.xlu0 %46
    %v52 = vsub.f32 %v26, %v41
    %v53 = vsub.f32 %v27, %v43
    %v54 = vsub.f32 %v28, %v45
    %v55 = vsub.f32 %v29, %v47
    %v58 = vlaneseq
    %v59 = vshrl.u32 %v58, 7
    %v60 = vsub.s32 0, %v59
    %v61 = vrot.slane %v30, %v60
    %v62 = vlaneseq
    %v63 = vshrl.u32 %v62, 7
    %v64 = vsub.s32 0, %v63
    %v65 = vrot.slane %v31, %v64
    %v68 = vmul.f32 %v52, %v61
    %v69 = vmul.f32 %v53, %v61
    %v70 = vmul.f32 %v54, %v65
    %v71 = vmul.f32 %v55, %v65
    %vm72 = vcmask 15360
    %73 = vst.msk [vmem:[%s4] sm:$0xff] %vm72, %v68
    %vm74 = vcmask 9216
    %75 = vst.msk [vmem:[%s4 + $0x8] sm:$0x3] %vm74, %v69
    %76 = vst.msk [vmem:[%s4 + $0x10] sm:$0xff] %vm72, %v70
    %77 = vst.msk [vmem:[%s4 + $0x18] sm:$0x3] %vm74, %v71
    %v78 = vmul.f32 %v26, %v61
    %v79 = vmul.f32 %v27, %v61
    %v80 = vmul.f32 %v28, %v65
    %v81 = vmul.f32 %v29, %v65
    %vm82 = vcmask 31760
    %83 = vst.msk [vmem:[%s4] sm:$0xff] %vm82, %v78
    %vm84 = vcmask 25616
    %85 = vst.msk [vmem:[%s4 + $0x8] sm:$0x3] %vm84, %v79
    %86 = vst.msk [vmem:[%s4 + $0x10] sm:$0xff] %vm82, %v80
    %87 = vst.msk [vmem:[%s4 + $0x18] sm:$0x3] %vm84, %v81
    // Predicated region
    $region14: #{_device_postprocess.1} parent=1 // pred_check
      _
    $region15: #{_device_postprocess.1} parent=1 // pred_check_branch
      %89 = sbr.rel (0) target = $region17
    $region16: #{_device_postprocess.1} parent=1 // pred_region
      %s91 = ssub.s32 32, 32
      %92 = vsyncadd [#allocation3], %s91
      %s94 = sshll.u32 [#allocation2], 4
      %s95 = int_to_ptr.vmem [resolvable:$true] %s94
      %97 = dma.vmem_to_hbm [thread:$0]  %s95, 32, %s3, [#allocation3]
    $region17: #{_device_postprocess.1} parent=1 // pred_fallthru
      _
    // Predicated region
    $region18: #{_device_postprocess.1} parent=1 // pred_check
      _
    $region19: #{_device_postprocess.1} parent=1 // pred_check_branch
      %99 = sbr.rel (0) target = $region21
    $region20: #{_device_postprocess.1} parent=1 // pred_region
      _
    $region21: #{_device_postprocess.1} parent=1 // pred_fallthru
      _
    // Predicated region
    $region22: #{_device_postprocess.1} parent=1 // pred_check
      _
    $region23: #{_device_postprocess.1} parent=1 // pred_check_branch
      %101 = sbr.rel (0) target = $region25
    $region24: #{_device_postprocess.1} parent=1 // pred_region
      %102 = dma.done [#allocation3], 32
    $region25: #{_device_postprocess.1} parent=1 // pred_fallthru
      _
    // Predicated region
    $region26: #{_device_postprocess.1} parent=1 // pred_check
      _
    $region27: #{_device_postprocess.1} parent=1 // pred_check_branch
      %104 = sbr.rel (0) target = $region29
    $region28: #{_device_postprocess.1} parent=1 // pred_region
      _
    $region29: #{_device_postprocess.1} parent=1 // pred_fallthru
      _
    %105 = vsyncpa [#allocation3], 1

</llo_original>
